<compile_context>
chip_gen: v7x
topology: tpu7x:2x2x1
jax: 0.10.0
libtpu: 0.0.40
codegen_flags: <defaults>
</compile_context>

<pallas_src>
import functools
import math

import jax
import jax.numpy as jnp
from jax.experimental import pallas as pl
from jax.experimental.pallas import tpu as pltpu


# ----------------------------------------------------------------------------------
# Kernel 1: fused QKV projection (plain layout, bf16 output, scale folded into Q cols)
# ----------------------------------------------------------------------------------
def qkv_proj_kernel(x_ref, w_ref, b_ref, cs_ref, o_ref):
    acc = jnp.dot(x_ref[...].astype(jnp.bfloat16), w_ref[...],
                  preferred_element_type=jnp.float32)              # (TS, 3D) f32
    # bias add and Q-column scaling in f32, then quantize once to bf16 for HBM.
    o_ref[...] = ((acc + b_ref[...]) * cs_ref[...]).astype(jnp.bfloat16)


# ----------------------------------------------------------------------------------
# Kernel 2: flash attention (online softmax over K tiles) + dense + residual + LayerNorm
# ----------------------------------------------------------------------------------
def flash_attn_kernel(q_ref, kT_ref, v_ref, x_ref, wd_ref, bd_ref, gamma_ref, beta_ref,
                      o_ref, m_scr, l_scr, acc_scr, *, eps):
    ki = pl.program_id(2)

    @pl.when(ki == 0)
    def _():
        m_scr[...] = jnp.full_like(m_scr[...], -jnp.inf)
        l_scr[...] = jnp.zeros_like(l_scr[...])
        acc_scr[...] = jnp.zeros_like(acc_scr[...])

    # (H, TQ, hd) x (H, hd, TK) -> (H, TQ, TK): natural batched MXU matmul, lane-dense K,
    # no transpose.  Scale 1/sqrt(hd) is already folded into q.
    s = jnp.einsum('hqd,hdk->hqk', q_ref[...], kT_ref[...],
                   preferred_element_type=jnp.float32)

    m_prev = m_scr[...]
    m_new = jnp.maximum(m_prev, jnp.max(s, axis=-1, keepdims=True))
    alpha = jnp.exp(m_prev - m_new)
    p = jnp.exp(s - m_new)
    l_scr[...] = alpha * l_scr[...] + jnp.sum(p, axis=-1, keepdims=True)
    acc_scr[...] = alpha * acc_scr[...] + jnp.einsum(
        'hqk,hkd->hqd', p.astype(jnp.bfloat16), v_ref[...],
        preferred_element_type=jnp.float32)
    m_scr[...] = m_new

    @pl.when(ki == pl.num_programs(2) - 1)
    def _():
        num_heads = acc_scr.shape[0]
        # softmax normalization: divide on the EUP slot.
        ctx = acc_scr[...] * pl.reciprocal(l_scr[...], approx=True)        # (H, TQ, hd) f32
        # Single structured relayout: heads concatenated back onto the lane axis.
        ctx_flat = jnp.concatenate([ctx[h] for h in range(num_heads)], axis=-1)  # (TQ, D)
        # Output dense: single (TQ, D) x (D, D) matmul (deep contraction keeps MXU full).
        dense = jnp.dot(ctx_flat.astype(jnp.bfloat16), wd_ref[...],
                        preferred_element_type=jnp.float32) + bd_ref[...]
        # Residual + LayerNorm (biased variance, torch.nn.LayerNorm semantics), f32.
        y = dense + x_ref[...]
        mu = jnp.mean(y, axis=-1, keepdims=True)
        var = jnp.mean((y - mu) ** 2, axis=-1, keepdims=True)
        o_ref[...] = (y - mu) * jax.lax.rsqrt(var + eps) * gamma_ref[...] + beta_ref[...]


def _pick_tile(n, target):
    """Largest legal tile <= target: full dim if it fits, else a multiple of 128 that
    divides n, else the full dim (always a legal block shape)."""
    if n <= target:
        return n
    for t in range(target, 0, -1):
        if n % t == 0 and t % 128 == 0:
            return t
    return n


def bert_self_attention_1d(x, wqkv, bqkv, wd, bd, gamma, beta, *, num_heads,
                           eps=1e-5, q_tile=None, k_tile=None, s_tile=None):
    """x: (B, S, D) f32.  wqkv: (D, 3D) math layout with PyTorch's per-head interleaved
    [q|k|v] column groups.  wd: (D, D).  Biases/gamma/beta: (1, N)."""
    B, S, D = x.shape
    H = num_heads
    assert D % H == 0
    hd = D // H

    TS = _pick_tile(S, 256 if s_tile is None else s_tile)
    TQ = _pick_tile(S, 256 if q_tile is None else q_tile)
    TK = _pick_tile(S, 512 if k_tile is None else k_tile)

    # --- wrapper-side layout plumbing (free): regroup interleaved per-head [q|k|v]
    #     columns into [Q_all | K_all | V_all]; build the Q-column scale vector. ---
    w4 = wqkv.reshape(D, H, 3, hd)
    b4 = bqkv.reshape(1, H, 3, hd)
    wg = jnp.concatenate([w4[:, :, i, :].reshape(D, D) for i in range(3)], axis=1)   # (D, 3D)
    bg = jnp.concatenate([b4[:, :, i, :].reshape(1, D) for i in range(3)], axis=1)   # (1, 3D)
    colscale = jnp.concatenate(
        [jnp.full((1, D), 1.0 / math.sqrt(hd), jnp.float32),
         jnp.ones((1, 2 * D), jnp.float32)], axis=1)                                 # (1, 3D)
    wg_b = wg.astype(jnp.bfloat16)
    wd_b = wd.astype(jnp.bfloat16)

    # ---------------- Kernel 1: QKV projection ----------------
    proj_cost = pl.CostEstimate(
        flops=2 * B * S * D * 3 * D,
        transcendentals=0,
        bytes_accessed=B * S * D * 4 + D * 3 * D * 2 + B * S * 3 * D * 2)

    qkv = pl.pallas_call(
        qkv_proj_kernel,
        out_shape=jax.ShapeDtypeStruct((B, S, 3 * D), jnp.bfloat16),
        grid=(B, S // TS),
        in_specs=[
            pl.BlockSpec((None, TS, D), lambda b, s: (b, s, 0)),                 # x tile
            pl.BlockSpec((D, 3 * D), lambda b, s: (0, 0),
                         pipeline_mode=pl.Buffered(1)),                          # W_qkv bf16
            pl.BlockSpec((1, 3 * D), lambda b, s: (0, 0),
                         pipeline_mode=pl.Buffered(1)),                          # b_qkv
            pl.BlockSpec((1, 3 * D), lambda b, s: (0, 0),
                         pipeline_mode=pl.Buffered(1)),                          # col scale
        ],
        out_specs=pl.BlockSpec((None, TS, 3 * D), lambda b, s: (b, s, 0)),
        compiler_params=pltpu.CompilerParams(
            dimension_semantics=("parallel", "parallel"),
            vmem_limit_bytes=48 * 1024 * 1024),
        cost_estimate=proj_cost,
    )(x, wg_b, bg, colscale)

    # --- wrapper-side head-major relayout (XLA, bf16): Q/V (B, H, S, hd); K stored
    #     lane-dense transposed (B, H, hd, S) so QK^T needs no in-kernel transpose. ---
    qkv5 = qkv.reshape(B, S, 3, H, hd)
    q_hm = jnp.transpose(qkv5[:, :, 0], (0, 2, 1, 3))    # (B, H, S, hd), already scaled
    kT_hm = jnp.transpose(qkv5[:, :, 1], (0, 2, 3, 1))   # (B, H, hd, S)
    v_hm = jnp.transpose(qkv5[:, :, 2], (0, 2, 1, 3))    # (B, H, S, hd)

    # ---------------- Kernel 2: flash attention + dense + residual + LayerNorm ----------------
    attn_cost = pl.CostEstimate(
        flops=4 * B * H * S * S * hd + 2 * B * S * D * D,
        transcendentals=B * H * S * S,
        bytes_accessed=B * S * (3 * D * 2 + 2 * D * 4) + D * D * 2 + 4 * D * 4)

    kernel = functools.partial(flash_attn_kernel, eps=eps)

    out = pl.pallas_call(
        kernel,
        out_shape=jax.ShapeDtypeStruct((B, S, D), jnp.float32),
        grid=(B, S // TQ, S // TK),
        in_specs=[
            pl.BlockSpec((None, H, TQ, hd), lambda b, qi, ki: (b, 0, qi, 0)),    # Q tile
            pl.BlockSpec((None, H, hd, TK), lambda b, qi, ki: (b, 0, 0, ki)),    # K^T tile
            pl.BlockSpec((None, H, TK, hd), lambda b, qi, ki: (b, 0, ki, 0)),    # V tile
            pl.BlockSpec((None, TQ, D), lambda b, qi, ki: (b, qi, 0)),           # x (residual)
            pl.BlockSpec((D, D), lambda b, qi, ki: (0, 0),
                         pipeline_mode=pl.Buffered(1)),                          # W_dense bf16
            pl.BlockSpec((1, D), lambda b, qi, ki: (0, 0),
                         pipeline_mode=pl.Buffered(1)),                          # b_dense
            pl.BlockSpec((1, D), lambda b, qi, ki: (0, 0),
                         pipeline_mode=pl.Buffered(1)),                          # LN gamma
            pl.BlockSpec((1, D), lambda b, qi, ki: (0, 0),
                         pipeline_mode=pl.Buffered(1)),                          # LN beta
        ],
        out_specs=pl.BlockSpec((None, TQ, D), lambda b, qi, ki: (b, qi, 0)),
        scratch_shapes=[
            pltpu.VMEM((H, TQ, 1), jnp.float32),    # running max m
            pltpu.VMEM((H, TQ, 1), jnp.float32),    # running sum l
            pltpu.VMEM((H, TQ, hd), jnp.float32),   # running context accumulator
        ],
        compiler_params=pltpu.CompilerParams(
            # K-tile axis carries the online-softmax state -> "arbitrary";
            # batch and query-tile axes are independent -> "parallel" (v7x megacore).
            dimension_semantics=("parallel", "parallel", "arbitrary"),
            vmem_limit_bytes=48 * 1024 * 1024),
        cost_estimate=attn_cost,
    )(q_hm, kT_hm, v_hm, x, wd_b, bd, gamma, beta)
    return out


def reference(x, wqkv, bqkv, wd, bd, gamma, beta, *, num_heads, eps=1e-5,
              matmul_dtype=jnp.float32):
    """Pure-JAX reference mirroring the PyTorch forward (seq_lens=None path).
    matmul_dtype=bfloat16 mirrors the kernel's mixed-precision matmuls."""
    B, S, D = x.shape
    hd = D // num_heads
    c = lambda a: a.astype(matmul_dtype)
    qkv = jnp.einsum('bsd,de->bse', c(x), c(wqkv),
                     preferred_element_type=jnp.float32) + bqkv[0]
    qkv = qkv.reshape(B, S, num_heads, 3 * hd).transpose(0, 2, 1, 3)
    q, k, v = jnp.split(qkv, 3, axis=-1)
    q = q / math.sqrt(hd)   # scale applied in f32 before the bf16 cast (matches kernel)
    s = jnp.einsum('bhqd,bhkd->bhqk', c(q), c(k), preferred_element_type=jnp.float32)
    p = jax.nn.softmax(s, axis=-1)
    ctx = jnp.einsum('bhqk,bhkd->bhqd', c(p), c(v), preferred_element_type=jnp.float32)
    ctx = ctx.transpose(0, 2, 1, 3).reshape(B, S, D)
    dense = jnp.einsum('bsd,de->bse', c(ctx), c(wd),
                       preferred_element_type=jnp.float32) + bd[0]
    y = dense + x
    mu = jnp.mean(y, axis=-1, keepdims=True)
    var = jnp.mean((y - mu) ** 2, axis=-1, keepdims=True)
    return (y - mu) * jax.lax.rsqrt(var + eps) * gamma[0] + beta[0]


if __name__ == "__main__":
    # Small shapes consistent with the module: batch=2, seq=8, hidden=32, heads=4.
    B, S, D, H = 2, 8, 32, 4

    key = jax.random.PRNGKey(0)
    k1, k2, k3, k4, k5 = jax.random.split(key, 5)

    x = jax.random.normal(k1, (B, S, D), dtype=jnp.float32)
    wqkv = jax.random.normal(k2, (D, 3 * D), dtype=jnp.float32) * (1.0 / math.sqrt(D))
    bqkv = jax.random.normal(k3, (1, 3 * D), dtype=jnp.float32) * 0.02
    wd = jax.random.normal(k4, (D, D), dtype=jnp.float32) * (1.0 / math.sqrt(D))
    bd = jax.random.normal(k5, (1, D), dtype=jnp.float32) * 0.02
    gamma = jnp.ones((1, D), dtype=jnp.float32)
    beta = jnp.zeros((1, D), dtype=jnp.float32)

    out = bert_self_attention_1d(x, wqkv, bqkv, wd, bd, gamma, beta, num_heads=H)
    out = jax.block_until_ready(out)
    assert out.shape == (B, S, D)

    # Strict check vs a reference that mirrors the kernel's bf16 matmul operands.
    ref_mirror = reference(x, wqkv, bqkv, wd, bd, gamma, beta, num_heads=H,
                           matmul_dtype=jnp.bfloat16)
    assert jnp.allclose(out, ref_mirror, atol=1e-2, rtol=1e-2), \
        "mismatch vs bf16-mirrored JAX reference"

    # Coarse backstop vs the pure-f32 module semantics (covers bf16 quantization error).
    ref_f32 = reference(x, wqkv, bqkv, wd, bd, gamma, beta, num_heads=H,
                        matmul_dtype=jnp.float32)
    assert jnp.allclose(out, ref_f32, atol=1e-1, rtol=1e-1), \
        "mismatch vs f32 JAX reference"

    print("KERNEL_OK")
</pallas_src>

<mosaic_0001>
module attributes {stable_mosaic.version = 11 : i64} {
  func.func @qkv_proj_kernel(%arg0: i32, %arg1: i32, %arg2: memref<1x8x32xf32, #tpu.memory_space<vmem>>, %arg3: memref<32x96xbf16, #tpu.memory_space<vmem>>, %arg4: memref<1x96xf32, #tpu.memory_space<vmem>>, %arg5: memref<1x96xf32, #tpu.memory_space<vmem>>, %arg6: memref<1x8x96xbf16, #tpu.memory_space<vmem>>) attributes {dimension_semantics = [#tpu.dimension_semantics<parallel>, #tpu.dimension_semantics<parallel>], iteration_bounds = array<i64: 2, 1>, scalar_prefetch = 0 : i64, scratch_operands = 0 : i64, tpu.core_type = #tpu.core_type<tc>, window_params = [{transform_indices = @transform_0, window_bounds = array<i64: 1, 8, 32>}, {pipeline_mode = #tpu.pipeline_mode<synchronous>, transform_indices = @transform_1, window_bounds = array<i64: 32, 96>}, {pipeline_mode = #tpu.pipeline_mode<synchronous>, transform_indices = @transform_2, window_bounds = array<i64: 1, 96>}, {pipeline_mode = #tpu.pipeline_mode<synchronous>, transform_indices = @transform_3, window_bounds = array<i64: 1, 96>}, {transform_indices = @transform_4, window_bounds = array<i64: 1, 8, 96>}]} {
    %c0 = arith.constant 0 : index
    %c0_0 = arith.constant 0 : index
    %c0_1 = arith.constant 0 : index
    %0 = vector.load %arg2[%c0, %c0_0, %c0_1] : memref<1x8x32xf32, #tpu.memory_space<vmem>>, vector<1x8x32xf32>
    %1 = vector.shape_cast %0 : vector<1x8x32xf32> to vector<8x32xf32>
    %2 = arith.truncf %1 : vector<8x32xf32> to vector<8x32xbf16>
    %c0_2 = arith.constant 0 : index
    %c0_3 = arith.constant 0 : index
    %3 = vector.load %arg3[%c0_2, %c0_3] : memref<32x96xbf16, #tpu.memory_space<vmem>>, vector<32x96xbf16>
    %cst = arith.constant dense<0.000000e+00> : vector<8x96xf32>
    %4 = tpu.matmul %2, %3, %cst {dimension_numbers = #tpu.dot_dimension_numbers<[1], [0], [0], [1], [0, 0, 1, 1], [], []>} : vector<8x32xbf16>, vector<32x96xbf16>, vector<8x96xf32> -> vector<8x96xf32>
    %c0_4 = arith.constant 0 : index
    %c0_5 = arith.constant 0 : index
    %5 = vector.load %arg4[%c0_4, %c0_5] : memref<1x96xf32, #tpu.memory_space<vmem>>, vector<1x96xf32>
    %6 = vector.broadcast %5 : vector<1x96xf32> to vector<8x96xf32>
    %7 = arith.addf %4, %6 : vector<8x96xf32>
    %c0_6 = arith.constant 0 : index
    %c0_7 = arith.constant 0 : index
    %8 = vector.load %arg5[%c0_6, %c0_7] : memref<1x96xf32, #tpu.memory_space<vmem>>, vector<1x96xf32>
    %9 = vector.broadcast %8 : vector<1x96xf32> to vector<8x96xf32>
    %10 = arith.mulf %7, %9 : vector<8x96xf32>
    %11 = arith.truncf %10 : vector<8x96xf32> to vector<8x96xbf16>
    %c0_8 = arith.constant 0 : index
    %c0_9 = arith.constant 0 : index
    %c0_10 = arith.constant 0 : index
    %12 = vector.load %arg6[%c0_8, %c0_9, %c0_10] : memref<1x8x96xbf16, #tpu.memory_space<vmem>>, vector<1x8x96xbf16>
    %13 = vector.shape_cast %12 : vector<1x8x96xbf16> to vector<8x96xbf16>
    %14 = vector.shape_cast %11 : vector<8x96xbf16> to vector<1x8x96xbf16>
    tpu.vector_store %arg6[%c0_8, %c0_9, %c0_10], %14 {strides = array<i32>} : memref<1x8x96xbf16, #tpu.memory_space<vmem>>, vector<1x8x96xbf16>,
    return
  }
  func.func @transform_0(%arg0: i32, %arg1: i32) -> (i32, i32, i32) {
    %c0_i32 = arith.constant 0 : i32
    %c0_i32_0 = arith.constant 0 : i32
    return %arg0, %arg1, %c0_i32 : i32, i32, i32
  }
  func.func @transform_1(%arg0: i32, %arg1: i32) -> (i32, i32) {
    %c0_i32 = arith.constant 0 : i32
    %c0_i32_0 = arith.constant 0 : i32
    %c0_i32_1 = arith.constant 0 : i32
    return %c0_i32, %c0_i32_0 : i32, i32
  }
  func.func @transform_2(%arg0: i32, %arg1: i32) -> (i32, i32) {
    %c0_i32 = arith.constant 0 : i32
    %c0_i32_0 = arith.constant 0 : i32
    %c0_i32_1 = arith.constant 0 : i32
    return %c0_i32, %c0_i32_0 : i32, i32
  }
  func.func @transform_3(%arg0: i32, %arg1: i32) -> (i32, i32) {
    %c0_i32 = arith.constant 0 : i32
    %c0_i32_0 = arith.constant 0 : i32
    %c0_i32_1 = arith.constant 0 : i32
    return %c0_i32, %c0_i32_0 : i32, i32
  }
  func.func @transform_4(%arg0: i32, %arg1: i32) -> (i32, i32, i32) {
    %c0_i32 = arith.constant 0 : i32
    %c0_i32_0 = arith.constant 0 : i32
    return %arg0, %arg1, %c0_i32 : i32, i32, i32
  }
}

</mosaic_0001>

<llo_original>
// kernel: tpu_custom_call.1
$region0: #{tpu_custom_call.1}
  #allocation0 [shape = 'u32[]', space=smem, size = 0x4, offset = 0x4, fixed_abs, tag = 'smem constant byte address 0x4 - core index']
  #allocation1 [shape = 'u32[144,128]{1,0:T(1,128)}', space=vmem, size = 0x12000, scoped, tag = 'internal scratch']
  %s0 = inlined_call_operand.hbm [shape: f32[2,8,32], index: 0, kind: input, shape index: {}]
  %s1 = inlined_call_operand.hbm [shape: bf16[32,96], index: 1, kind: input, shape index: {}]
  %s2 = inlined_call_operand.vmem [shape: f32[1,96], index: 2, kind: input, shape index: {}]
  %s3 = inlined_call_operand.vmem [shape: f32[1,96], index: 3, kind: input, shape index: {}]
  %s4 = inlined_call_operand.hbm [shape: bf16[2,8,96], index: 4, kind: output, shape index: {}]
  %s5 = sld [smem:[#allocation0]]
  $region57: #{tpu_custom_call.1} parent=0
    _
  %s7 = ssub.s32 1, %s5
  %s8 = scalar_select 0, %s7, %s5
  $region1: #{tpu_custom_call.1} parent=0
    #allocation2 [shape = 'u8[8192]{0}', space=vmem, size = 0x2000, scoped, tag = 'input window, operand 0']
    #allocation3 [shape = 's32[2]{0}', space=sflag, size = 0x8, scoped, tag = 'scoped memory for tpu_custom_call.1']
    #allocation4 [shape = 's32[2]{0}', space=sflag, size = 0x8, scoped, tag = 'scoped memory for tpu_custom_call.1']
    #allocation5 [shape = 'u8[8192]{0}', space=vmem, size = 0x2000, scoped, tag = 'input window, operand 1, single buffered']
    #allocation6 [shape = 's32[1]{0}', space=sflag, size = 0x4, scoped, tag = 'scoped memory for tpu_custom_call.1']
    #allocation7 [shape = 'u8[4096]{0}', space=vmem, size = 0x1000, scoped, tag = 'output window, operand 0']
    %9 = vsyncpa [#allocation3], 0
    %s10 = scalar_lea.sflag [#allocation3], 1
    %11 = vsyncpa %s10, 0
    %12 = vsyncpa [#allocation6], 0
    %13 = vsyncpa [#allocation4], 0
    %s14 = scalar_lea.sflag [#allocation4], 1
    %15 = vsyncpa %s14, 0
    loop: start=0, step=1, limit=4
    $region2: #{tpu_custom_call.1} parent=1 // loop_pre_header
      _
    $region3: #{tpu_custom_call.1} parent=1 // loop_header
      %s17 = sphi 0, %s21
      %p18 = scmp.ge.s32.totalorder %s17, 4
      %s24 = sphi 0, %s36
      %s25 = sphi 0, %s32
      %s26 = sphi 0, %s24
      %s27 = sphi 0, %s25
      %s28 = sphi 0, %s26
      %s29 = sphi 0, %s27
      %s41 = sphi 0, %s43
      %s44 = sphi 0, %s41
      %s45 = sphi 0, %s44
      %s61 = sphi 0, %s45
      %s65 = sphi 0, %s65
      %s67 = sphi 0, %s65
      %s68 = sphi 0, %s67
      %s82 = sphi 0, %s68
      %s86 = sphi 0, %s86
      %s88 = sphi 0, %s86
      %s89 = sphi 0, %s88
      %s103 = sphi 0, %s89
      %s107 = sphi 0, %s107
      %s109 = sphi 0, %s107
      %s110 = sphi 0, %s109
      %s124 = sphi 0, %s110
      %s132 = sphi 0, %s134
      %s135 = sphi 0, %s132
      %s136 = sphi 0, %s135
      %s152 = sphi 0, %s136
    $region4: #{tpu_custom_call.1} parent=1 // loop_header_branch
      %20 = sbr.rel (%p18) target = $region8
    $region5: #{tpu_custom_call.1} parent=1 // loop_body
      %s22 = ssub.s32 %s17, 1
      %s23 = ssub.s32 %s17, 2
      %s30 = sadd.s32 1, %s25
      %p31 = scmp.ge.s32.totalorder %s30, 1
      %s32 = scalar_select %p31, 0, %s30
      %s33 = sadd.s32 1, %s24
      %s34 = scalar_select %p31, %s33, %s24
      %p35 = scmp.ge.s32.totalorder %s34, 2
      %s36 = scalar_select %p35, 0, %s34
      %s37 = ssub.s32 %s24, %s36
      %s38 = ssub.s32 %s25, %s32
      %s39 = sor.u32 %s37, %s38
      %p40 = scmp.eq.s32.totalorder %s39, 0
      %s42 = sadd.s32 %s41, 1
      %s43 = scalar_select %p40, %s41, %s42
      %p46 = pneg %p40
      %p47 = scmp.eq.s32.totalorder %s17, 1
      %p48 = por %p46, %p47
      %p49 = scmp.ne.s32.totalorder %s41, %s44
      %p50 = scmp.eq.s32.totalorder %s17, 0
      %p51 = por %p49, %p50
      %p52 = scmp.ne.s32.totalorder %s41, %s44
      %p53 = scmp.eq.s32.totalorder %s22, 1
      %p54 = por %p52, %p53
      %p55 = scmp.ne.s32.totalorder %s44, %s45
      %p56 = scmp.eq.s32.totalorder %s22, 0
      %p57 = por %p55, %p56
      %p58 = scmp.ne.s32.totalorder %s44, %s45
      %p59 = scmp.eq.s32.totalorder %s23, 1
      %p60 = por %p58, %p59
      %p62 = scmp.ne.s32.totalorder %s45, %s61
      %p63 = scmp.eq.s32.totalorder %s23, 0
      %p64 = por %p62, %p63
      %s66 = sadd.s32 %s65, 1
      %p69 = scmp.eq.s32.totalorder %s17, 1
      %p70 = scmp.ne.s32.totalorder %s65, %s67
      %p71 = scmp.eq.s32.totalorder %s17, 0
      %p72 = por %p70, %p71
      %p73 = scmp.ne.s32.totalorder %s65, %s67
      %p74 = scmp.eq.s32.totalorder %s22, 1
      %p75 = por %p73, %p74
      %p76 = scmp.ne.s32.totalorder %s67, %s68
      %p77 = scmp.eq.s32.totalorder %s22, 0
      %p78 = por %p76, %p77
      %p79 = scmp.ne.s32.totalorder %s67, %s68
      %p80 = scmp.eq.s32.totalorder %s23, 1
      %p81 = por %p79, %p80
      %p83 = scmp.ne.s32.totalorder %s68, %s82
      %p84 = scmp.eq.s32.totalorder %s23, 0
      %p85 = por %p83, %p84
      %s87 = sadd.s32 %s86, 1
      %p90 = scmp.eq.s32.totalorder %s17, 1
      %p91 = scmp.ne.s32.totalorder %s86, %s88
      %p92 = scmp.eq.s32.totalorder %s17, 0
      %p93 = por %p91, %p92
      %p94 = scmp.ne.s32.totalorder %s86, %s88
      %p95 = scmp.eq.s32.totalorder %s22, 1
      %p96 = por %p94, %p95
      %p97 = scmp.ne.s32.totalorder %s88, %s89
      %p98 = scmp.eq.s32.totalorder %s22, 0
      %p99 = por %p97, %p98
      %p100 = scmp.ne.s32.totalorder %s88, %s89
      %p101 = scmp.eq.s32.totalorder %s23, 1
      %p102 = por %p100, %p101
      %p104 = scmp.ne.s32.totalorder %s89, %s103
      %p105 = scmp.eq.s32.totalorder %s23, 0
      %p106 = por %p104, %p105
      %s108 = sadd.s32 %s107, 1
      %p111 = scmp.eq.s32.totalorder %s17, 1
      %p112 = scmp.ne.s32.totalorder %s107, %s109
      %p113 = scmp.eq.s32.totalorder %s17, 0
      %p114 = por %p112, %p113
      %p115 = scmp.ne.s32.totalorder %s107, %s109
      %p116 = scmp.eq.s32.totalorder %s22, 1
      %p117 = por %p115, %p116
      %p118 = scmp.ne.s32.totalorder %s109, %s110
      %p119 = scmp.eq.s32.totalorder %s22, 0
      %p120 = por %p118, %p119
      %p121 = scmp.ne.s32.totalorder %s109, %s110
      %p122 = scmp.eq.s32.totalorder %s23, 1
      %p123 = por %p121, %p122
      %p125 = scmp.ne.s32.totalorder %s110, %s124
      %p126 = scmp.eq.s32.totalorder %s23, 0
      %p127 = por %p125, %p126
      %s128 = ssub.s32 %s24, %s36
      %s129 = ssub.s32 %s25, %s32
      %s130 = sor.u32 %s128, %s129
      %p131 = scmp.eq.s32.totalorder %s130, 0
      %s133 = sadd.s32 %s132, 1
      %s134 = scalar_select %p131, %s132, %s133
      %p137 = pneg %p131
      %p138 = scmp.eq.s32.totalorder %s17, 1
      %p139 = por %p137, %p138
      %p140 = scmp.ne.s32.totalorder %s132, %s135
      %p141 = scmp.eq.s32.totalorder %s17, 0
      %p142 = por %p140, %p141
      %p143 = scmp.ne.s32.totalorder %s132, %s135
      %p144 = scmp.eq.s32.totalorder %s22, 1
      %p145 = por %p143, %p144
      %p146 = scmp.ne.s32.totalorder %s135, %s136
      %p147 = scmp.eq.s32.totalorder %s22, 0
      %p148 = por %p146, %p147
      %p149 = scmp.ne.s32.totalorder %s135, %s136
      %p150 = scmp.eq.s32.totalorder %s23, 1
      %p151 = por %p149, %p150
      %p153 = scmp.ne.s32.totalorder %s136, %s152
      %p154 = scmp.eq.s32.totalorder %s23, 0
      %p155 = por %p153, %p154
      %p156 = scmp.le.s32.totalorder 1, %s17
      %p157 = scmp.lt.s32.totalorder %s17, 3
      %p158 = pnand %p156, %p157
      %p159 = pneg %p158
      // Predicated region
      $region9: #{tpu_custom_call.1} parent=5 // pred_check
        _
      $region10: #{tpu_custom_call.1} parent=5 // pred_check_branch
        %161 = sbr.rel (%p158) target = $region12
      $region11: #{tpu_custom_call.1} parent=5 // pred_region
        %s162 = ssub.s32 %s17, 1
        // Predicated region
        $region13: #{tpu_custom_call.1} parent=11 // pred_check
          %p163 = pneg %p78
        $region14: #{tpu_custom_call.1} parent=11 // pred_check_branch
          %165 = sbr.rel (%p163) target = $region16
        $region15: #{tpu_custom_call.1} parent=11 // pred_region
          %s167 = ssub.s32 256, 256
          %168 = vsyncadd [#allocation6], %s167
          %s169 = sshll.u32 [#allocation5], 4
          %s170 = int_to_ptr.vmem [resolvable:$true] %s169
          %175 = dma.hbm_to_vmem [thread:$0]  %s1, 256, %s170, [#allocation6], 64, 64, 4
        $region16: #{tpu_custom_call.1} parent=11 // pred_fallthru
          _
        // Predicated region
        $region17: #{tpu_custom_call.1} parent=11 // pred_check
          %p176 = pneg %p99
        $region18: #{tpu_custom_call.1} parent=11 // pred_check_branch
          %178 = sbr.rel (%p176) target = $region20
        $region19: #{tpu_custom_call.1} parent=11 // pred_region
          _
        $region20: #{tpu_custom_call.1} parent=11 // pred_fallthru
          _
        // Predicated region
        $region21: #{tpu_custom_call.1} parent=11 // pred_check
          %p179 = pneg %p120
        $region22: #{tpu_custom_call.1} parent=11 // pred_check_branch
          %181 = sbr.rel (%p179) target = $region24
        $region23: #{tpu_custom_call.1} parent=11 // pred_region
          _
        $region24: #{tpu_custom_call.1} parent=11 // pred_fallthru
          _
      $region12: #{tpu_custom_call.1} parent=5 // pred_fallthru
        _
      %p182 = scmp.lt.s32.totalorder %s17, 2
      // Predicated region
      $region25: #{tpu_custom_call.1} parent=5 // pred_check
        %p183 = pneg %p182
      $region26: #{tpu_custom_call.1} parent=5 // pred_check_branch
        %185 = sbr.rel (%p183) target = $region28
      $region27: #{tpu_custom_call.1} parent=5 // pred_region
        // Predicated region
        $region29: #{tpu_custom_call.1} parent=27 // pred_check
          %p186 = pneg %p51
        $region30: #{tpu_custom_call.1} parent=27 // pred_check_branch
          %188 = sbr.rel (%p186) target = $region32
        $region31: #{tpu_custom_call.1} parent=27 // pred_region
          %s189 = sand.u32 %s41, 1
          %s190 = scalar_lea.sflag [#allocation3], %s189
          %s191 = sand.u32 %s41, 1
          %s192 = smul.addr %s191, 8
          %s193 = scalar_lea.vmem [#allocation2], %s192
          %s195 = ssub.s32 128, 128
          %196 = vsyncadd %s190, %s195
          %s197 = sadd.s32 %s25, %s24
          %s198 = smul.addr %s197, 128
          %s199 = scalar_lea.hbm %s0, %s198
          %s201 = sshll.u32 %s193, 4
          %s202 = int_to_ptr.vmem [resolvable:$true] %s201
          %204 = dma.hbm_to_vmem [thread:$0]  %s199, 128, %s202, %s190
        $region32: #{tpu_custom_call.1} parent=27 // pred_fallthru
          _
      $region28: #{tpu_custom_call.1} parent=5 // pred_fallthru
        _
      %p205 = scmp.le.s32.totalorder 1, %s17
      %p206 = scmp.lt.s32.totalorder %s17, 3
      %p207 = pnand %p205, %p206
      %p208 = pneg %p207
      // Predicated region
      $region33: #{tpu_custom_call.1} parent=5 // pred_check
        _
      $region34: #{tpu_custom_call.1} parent=5 // pred_check_branch
        %210 = sbr.rel (%p207) target = $region36
      $region35: #{tpu_custom_call.1} parent=5 // pred_region
        %s211 = ssub.s32 %s17, 1
        %s212 = sand.u32 %s44, 1
        %s213 = scalar_lea.sflag [#allocation3], %s212
        %s214 = sand.u32 %s44, 1
        %s215 = smul.addr %s214, 8
        %s216 = scalar_lea.vmem [#allocation2], %s215
        // Predicated region
        $region37: #{tpu_custom_call.1} parent=35 // pred_check
          %p217 = pneg %p57
        $region38: #{tpu_custom_call.1} parent=35 // pred_check_branch
          %219 = sbr.rel (%p217) target = $region40
        $region39: #{tpu_custom_call.1} parent=35 // pred_region
          %220 = dma.done %s213, 128
        $region40: #{tpu_custom_call.1} parent=35 // pred_fallthru
          _
        // Predicated region
        $region41: #{tpu_custom_call.1} parent=35 // pred_check
          %p221 = pneg %p78
        $region42: #{tpu_custom_call.1} parent=35 // pred_check_branch
          %223 = sbr.rel (%p221) target = $region44
        $region43: #{tpu_custom_call.1} parent=35 // pred_region
          %224 = dma.done [#allocation6], 256
        $region44: #{tpu_custom_call.1} parent=35 // pred_fallthru
          _
        %s225 = sand.u32 %s44, 1
        %s226 = scalar_lea.sflag [#allocation3], %s225
        %s227 = sand.u32 %s44, 1
        %s228 = smul.addr %s227, 8
        %s229 = scalar_lea.vmem [#allocation2], %s228
        %p230 = pneg %p57
        %p231 = pneg %p54
        %p232 = pneg %p78
        %p233 = pneg %p75
        %p234 = pneg %p99
        %p235 = pneg %p96
        %p236 = pneg %p120
        %p237 = pneg %p117
        %p238 = pneg %p148
        %p239 = pneg %p145
        %s240 = sand.u32 %s135, 1
        %s241 = scalar_lea.sflag [#allocation4], %s240
        %s242 = sand.u32 %s135, 1
        %s243 = smul.addr %s242, 4
        %s244 = scalar_lea.vmem [#allocation7], %s243
        %v246 = vld [vmem:[%s216] sm:$0xff]
        %v247 = vpack.c.bf16 %v246, %v246
        %v248 = vld [vmem:[#allocation5] sm:$0xf]
        %v249 = vld [vmem:[#allocation5 + $0x4] sm:$0xf]
        %v250 = vld [vmem:[#allocation5 + $0x8] sm:$0xf]
        %v251 = vld [vmem:[#allocation5 + $0xc] sm:$0xf]
        %v252 = vld [vmem:[%s2] sm:$0x1]
        %v254 = vlaneseq
        %v255 = vshrl.u32 %v254, 7
        %v256 = vsub.s32 0, %v255
        %v257 = vrot.slane %v252, %v256
        %v263 = vunpack.c.l.b16 %v248
        %v264 = vunpack.c.l.b16 %v249
        %v265 = vunpack.c.l.b16 %v250
        %v266 = vunpack.c.l.b16 %v251
        %v267 = vpack.c.b16 %v264, %v263
        %v268 = vpack.c.b16 %v266, %v265
        %vm271 = vcmask 261120
        %v273 = vsel %vm271, %v247, 0
        %275 = vmatprep.subr.bf16.mxu0 0
        %276 = vmatpush1.bf16.msra.mxu0 %v267
        %277 = vmatprep.subr.bf16.mxu0 0
        %278 = vmatpush1.bf16.msra.mxu0 %v268
        %279 = vmatprep.subr.bf16.mxu0 0
        %280 = vmatpush1.bf16.msra.mxu0 0
        %281 = vmatprep.subr.bf16.mxu0 0
        %282 = vmatpush1.bf16.msra.mxu0 0
        %283 = vmatprep.subr.bf16.mxu0 0
        %284 = vmatpush1.bf16.msra.mxu0 0
        %285 = vmatprep.subr.bf16.mxu0 0
        %286 = vmatpush1.bf16.msra.mxu0 0
        %287 = vmatprep.subr.bf16.mxu0 0
        %288 = vmatpush1.bf16.msra.mxu0 0
        %289 = vmatprep.subr.bf16.mxu0 0
        %290 = vmatpush1.bf16.msra.mxu0 0
        %291 = vmatprep.subr.bf16.mxu0 0
        %292 = vmatpush1.bf16.msra.mxu0 0
        %293 = vmatprep.subr.bf16.mxu0 0
        %294 = vmatpush1.bf16.msra.mxu0 0
        %295 = vmatprep.subr.bf16.mxu0 0
        %296 = vmatpush1.bf16.msra.mxu0 0
        %297 = vmatprep.subr.bf16.mxu0 0
        %298 = vmatpush1.bf16.msra.mxu0 0
        %299 = vmatprep.subr.bf16.mxu0 0
        %300 = vmatpush1.bf16.msra.mxu0 0
        %301 = vmatprep.subr.bf16.mxu0 0
        %302 = vmatpush1.bf16.msra.mxu0 0
        %303 = vmatprep.subr.bf16.mxu0 0
        %304 = vmatpush1.bf16.msra.mxu0 0
        %305 = vmatprep.subr.bf16.mxu0 0
        %306 = vmatpush1.bf16.msra.mxu0 0
        %307 = vmatprep.mubr.bf16.mxu0 0
        %308 = vmatmul.mubr.bf16.gmra.mrb[0].mxu0 %v273
        %v309 = vpop.f32.mrb[0].mxu0
        %v310 = vadd.f32 %v257, %v309
        %v311 = vpop.f32.mrb[0].mxu0
        %v312 = vpop.f32.mrb[0].mxu0
        %v313 = vpop.f32.mrb[0].mxu0
        %314 = vdwg.mxu0
        %v315 = vld [vmem:[%s3] sm:$0x1]
        %v317 = vlaneseq
        %v318 = vshrl.u32 %v317, 7
        %v319 = vsub.s32 0, %v318
        %v320 = vrot.slane %v315, %v319
        %v322 = vmul.f32 %v310, %v320
        %v323 = vpack.c.bf16 %v322, %v322
        %vm324 = vcmask 781312
        %325 = vst.msk [vmem:[%s244] sm:$0xf] %vm324, %v323
        %s326 = sand.u32 %s135, 1
        %s327 = scalar_lea.sflag [#allocation4], %s326
        %s328 = sand.u32 %s135, 1
        %s329 = smul.addr %s328, 4
        %s330 = scalar_lea.vmem [#allocation7], %s329
        // Predicated region
        $region45: #{tpu_custom_call.1} parent=35 // pred_check
          %p331 = pneg %p145
        $region46: #{tpu_custom_call.1} parent=35 // pred_check_branch
          %333 = sbr.rel (%p331) target = $region48
        $region47: #{tpu_custom_call.1} parent=35 // pred_region
          %s335 = ssub.s32 64, 64
          %336 = vsyncadd %s327, %s335
          %s337 = sadd.s32 %s27, %s26
          %s338 = smul.addr %s337, 64
          %s339 = scalar_lea.hbm %s4, %s338
          %s341 = sshll.u32 %s330, 4
          %s342 = int_to_ptr.vmem [resolvable:$true] %s341
          %344 = dma.vmem_to_hbm [thread:$0]  %s342, 64, %s339, %s327
        $region48: #{tpu_custom_call.1} parent=35 // pred_fallthru
          _
      $region36: #{tpu_custom_call.1} parent=5 // pred_fallthru
        _
      %p345 = scmp.le.s32.totalorder 2, %s17
      // Predicated region
      $region49: #{tpu_custom_call.1} parent=5 // pred_check
        %p346 = pneg %p345
      $region50: #{tpu_custom_call.1} parent=5 // pred_check_branch
        %348 = sbr.rel (%p346) target = $region52
      $region51: #{tpu_custom_call.1} parent=5 // pred_region
        %s349 = ssub.s32 %s17, 2
        // Predicated region
        $region53: #{tpu_custom_call.1} parent=51 // pred_check
          %p350 = pneg %p151
        $region54: #{tpu_custom_call.1} parent=51 // pred_check_branch
          %352 = sbr.rel (%p350) target = $region56
        $region55: #{tpu_custom_call.1} parent=51 // pred_region
          %s353 = sand.u32 %s136, 1
          %s354 = scalar_lea.sflag [#allocation4], %s353
          %s355 = sand.u32 %s136, 1
          %s356 = smul.addr %s355, 4
          %s357 = scalar_lea.vmem [#allocation7], %s356
          %358 = dma.done %s354, 64
        $region56: #{tpu_custom_call.1} parent=51 // pred_fallthru
          _
      $region52: #{tpu_custom_call.1} parent=5 // pred_fallthru
        _
    $region6: #{tpu_custom_call.1} parent=1 // loop_footer
      %s21 = sadd.s32 1, %s17
    $region7: #{tpu_custom_call.1} parent=1 // loop_footer_branch
      %16 = sbr.rel target = $region3
    $region8: #{tpu_custom_call.1} parent=1 // loop_exit
      _
    %359 = vsyncpa [#allocation3], 1
    %s360 = scalar_lea.sflag [#allocation3], 1
    %361 = vsyncpa %s360, 1
    %362 = vsyncpa [#allocation6], 1
    %363 = vsyncpa [#allocation4], 1
    %s364 = scalar_lea.sflag [#allocation4], 1
    %365 = vsyncpa %s364, 1

</llo_original>
